<compile_context>
chip_gen: v7x
topology: tpu7x:2x2x1
jax: 0.10.0
libtpu: 0.0.40
codegen_flags: <defaults>
</compile_context>

<pallas_src>
import jax
import jax.numpy as jnp
from jax.experimental import pallas as pl
from jax.experimental.pallas import tpu as pltpu

_SUBLANES = 8
_LANES = 128
_MAX_TILE_LANES = 65536  # 8 * 65536 * 4 B = 2 MiB per output block (x2 buffers = 4 MiB)


def _splat_kernel(val_ref, o_ref):
    # val_ref: SMEM f32[1]  -- already exp(variance * 10.0) (scalar-prefetched)
    # o_ref  : VMEM f32[8, tile_lanes]
    o_ref[...] = jnp.full(o_ref.shape, val_ref[0], dtype=o_ref.dtype)


def single_variance_forward(x: jax.Array, variance: jax.Array) -> jax.Array:
    """Pallas equivalent of SingleVarianceNetwork.forward.

    Args:
      x: any array whose leading dim is N (only len(x) is used).
      variance: scalar f32 parameter.
    Returns:
      f32[N] = exp(variance * 10.0) broadcast to length N.
    """
    n = x.shape[0]
    val = jnp.exp(jnp.asarray(variance, jnp.float32) * 10.0)
    if n == 0:
        return jnp.zeros((0,), jnp.float32)

    # Pad N so the (8, L) output slab is full-vreg dense (lanes multiple of 128)
    # and tiles evenly across the grid -> every store is an unmasked full vst.
    min_lanes = pl.cdiv(n, _SUBLANES * _LANES) * _LANES   # lanes needed, multiple of 128
    tile_lanes = min(min_lanes, _MAX_TILE_LANES)
    num_blocks = pl.cdiv(min_lanes, tile_lanes)
    total_lanes = num_blocks * tile_lanes

    out = pl.pallas_call(
        _splat_kernel,
        out_shape=jax.ShapeDtypeStruct((_SUBLANES, total_lanes), jnp.float32),
        grid_spec=pltpu.PrefetchScalarGridSpec(
            num_scalar_prefetch=1,      # the scalar lives in SMEM
            grid=(num_blocks,),
            in_specs=[],
            out_specs=pl.BlockSpec((_SUBLANES, tile_lanes),
                                   lambda i, val_ref: (0, i)),
        ),
        compiler_params=pltpu.CompilerParams(
            dimension_semantics=("parallel",),   # megacore sharding on v7x
        ),
        cost_estimate=pl.CostEstimate(
            flops=0,
            transcendentals=0,
            bytes_accessed=_SUBLANES * total_lanes * 4 + 4,
        ),
    )(val.reshape(1))

    # Constant splat: any flatten order is valid; slice the pad off.
    return out.reshape(-1)[:n]


if __name__ == "__main__":
    key = jax.random.PRNGKey(0)

    # Deterministic "parameter init" (module __init__ takes init_val).
    init_val = 0.3
    variance = jnp.float32(init_val)

    # Example input: N=8 sample points with 3 coords (only len(x) matters).
    x = jax.random.normal(key, (8, 3), dtype=jnp.float32)

    out = single_variance_forward(x, variance)
    out = jax.block_until_ready(out)

    # Reference check (plain JAX, matches the PyTorch forward).
    ref = jnp.ones((x.shape[0],), jnp.float32) * jnp.exp(variance * 10.0)
    assert out.shape == (x.shape[0],)
    assert out.dtype == jnp.float32
    assert jnp.allclose(out, ref, rtol=1e-6, atol=1e-6)

    print("KERNEL_OK")
</pallas_src>

<mosaic_0001>
module attributes {stable_mosaic.version = 11 : i64} {
  func.func @_splat_kernel(%arg0: i32, %arg1: memref<1xf32, #tpu.memory_space<smem>>, %arg2: memref<8x128xf32, #tpu.memory_space<vmem>>) attributes {dimension_semantics = [#tpu.dimension_semantics<parallel>], iteration_bounds = array<i64: 1>, scalar_prefetch = 1 : i64, scratch_operands = 0 : i64, tpu.core_type = #tpu.core_type<tc>, window_params = [{transform_indices = @transform_0, window_bounds = array<i64: 8, 128>}]} {
    %c0 = arith.constant 0 : index
    %0 = memref.load %arg1[%c0] : memref<1xf32, #tpu.memory_space<smem>>
    %1 = vector.broadcast %0 : f32 to vector<8x128xf32>
    %c0_0 = arith.constant 0 : index
    %c0_1 = arith.constant 0 : index
    %2 = vector.load %arg2[%c0_0, %c0_1] : memref<8x128xf32, #tpu.memory_space<vmem>>, vector<8x128xf32>
    tpu.vector_store %arg2[%c0_0, %c0_1], %1 {strides = array<i32>} : memref<8x128xf32, #tpu.memory_space<vmem>>, vector<8x128xf32>,
    return
  }
  func.func @transform_0(%arg0: i32, %arg1: memref<1xf32, #tpu.memory_space<smem>>) -> (i32, i32) {
    %c0_i32 = arith.constant 0 : i32
    %c0_i32_0 = arith.constant 0 : i32
    return %c0_i32, %arg0 : i32, i32
  }
}

</mosaic_0001>

<llo_original>
// kernel: tpu_custom_call.1
$region0: #{tpu_custom_call.1}
  #allocation0 [shape = 'u32[]', space=smem, size = 0x4, offset = 0x4, fixed_abs, tag = 'smem constant byte address 0x4 - core index']
  #allocation1 [shape = 'u32[144,128]{1,0:T(1,128)}', space=vmem, size = 0x12000, scoped, tag = 'internal scratch']
  #allocation2 [shape = 's32[1]{0}', space=sflag, size = 0x4, scoped, tag = 'scoped memory for tpu_custom_call.1']
  #allocation3 [shape = 'f32[1]{0:T(128)S(6)}', space=smem, size = 0x200, scoped, tag = 'prefetched SMEM operand 0']
  %s0 = inlined_call_operand.<no memory space> [shape: f32[1], index: 0, kind: input, shape index: {}]
  %s1 = inlined_call_operand.hbm [shape: f32[8,128], index: 1, kind: output, shape index: {}]
  %s2 = sld [smem:[#allocation0]]
  $region10: #{tpu_custom_call.1} parent=0
    _
  %s4 = ssub.s32 1, %s2
  %s5 = scalar_select 0, %s4, %s2
  %6 = sst [smem:[#allocation3]] %s0
  $region1: #{tpu_custom_call.1} parent=0
    #allocation4 [shape = 'u8[4096]{0}', space=vmem, size = 0x1000, scoped, tag = 'output window, operand 0, single buffered']
    #allocation5 [shape = 's32[1]{0}', space=sflag, size = 0x4, scoped, tag = 'scoped memory for tpu_custom_call.1']
    %7 = vsyncpa [#allocation5], 0
    %s8 = sld [smem:[#allocation3]]
    %v9 = vstv %s8
    %10 = vst [vmem:[#allocation4] sm:$0xff] %v9
    // Predicated region
    $region2: #{tpu_custom_call.1} parent=1 // pred_check
      _
    $region3: #{tpu_custom_call.1} parent=1 // pred_check_branch
      %12 = sbr.rel (0) target = $region5
    $region4: #{tpu_custom_call.1} parent=1 // pred_region
      %s14 = ssub.s32 128, 128
      %15 = vsyncadd [#allocation5], %s14
      %s17 = sshll.u32 [#allocation4], 4
      %s18 = int_to_ptr.vmem [resolvable:$true] %s17
      %20 = dma.vmem_to_hbm [thread:$0]  %s18, 128, %s1, [#allocation5]
    $region5: #{tpu_custom_call.1} parent=1 // pred_fallthru
      _
    // Predicated region
    $region6: #{tpu_custom_call.1} parent=1 // pred_check
      _
    $region7: #{tpu_custom_call.1} parent=1 // pred_check_branch
      %22 = sbr.rel (0) target = $region9
    $region8: #{tpu_custom_call.1} parent=1 // pred_region
      %23 = dma.done [#allocation5], 128
    $region9: #{tpu_custom_call.1} parent=1 // pred_fallthru
      _
    %24 = vsyncpa [#allocation5], 1

</llo_original>
